<compile_context>
chip_gen: v7x
topology: tpu7x:2x2x1
jax: 0.10.0
libtpu: 0.0.40
codegen_flags: <defaults>
</compile_context>

<pallas_src>
import jax
import jax.numpy as jnp
from jax.experimental import pallas as pl
from jax.experimental.pallas import tpu as pltpu


def _round_up(x: int, m: int) -> int:
    return ((x + m - 1) // m) * m


def ddpg_critic_kernel(x_ref, w1_ref, b1_ref, w2_ref, b2_ref, w3_ref, b3_ref,
                       o_ref):
    """Fused 3-layer MLP for one batch tile.

    x_ref:  [TB, Din] f32      w1_ref: [Din, 400] bf16   b1_ref: [1, 400] f32
    w2_ref: [400, 300] bf16    b2_ref: [1, 300] f32
    w3_ref: [1, 300] f32 (output-layer weight as a row)
    b3_ref: [1, 1] f32 in SMEM (scalar)
    o_ref:  [TB, 1] f32
    """
    # Layer 1: bf16 MXU matmul with f32 accumulation; bias + ReLU fused on VPU.
    x = x_ref[...].astype(jnp.bfloat16)                              # [TB, Din]
    h1 = jnp.dot(x, w1_ref[...], preferred_element_type=jnp.float32)
    h1 = jnp.maximum(h1 + b1_ref[...], 0.0)                          # [TB, 400]

    # Layer 2: bf16 MXU matmul with f32 accumulation.
    h2 = jnp.dot(h1.astype(jnp.bfloat16), w2_ref[...],
                 preferred_element_type=jnp.float32)
    h2 = jnp.maximum(h2 + b2_ref[...], 0.0)                          # [TB, 300]

    # Output head (N=1): VPU multiply + cross-lane (XLU) reduction instead of
    # a 1-lane-wide MXU matmul; bias read as an SMEM scalar.
    out = jnp.sum(h2 * w3_ref[...], axis=-1, keepdims=True) + b3_ref[0, 0]
    o_ref[...] = out.astype(o_ref.dtype)                             # [TB, 1]


def ddpg_critic_forward(obs_action, params, *, block_batch=512):
    """Batch-tiled Pallas forward. Handles batch not divisible by the tile."""
    w1, b1, w2, b2, w3_row, b3 = params
    batch, din = obs_action.shape
    h1_dim = w1.shape[1]
    h2_dim = w2.shape[1]

    # Tile size: multiple of 8 sublanes, at most `block_batch`.
    tb = min(block_batch, _round_up(batch, 8))
    padded = _round_up(batch, tb)
    if padded != batch:
        obs_action = jnp.pad(obs_action, ((0, padded - batch), (0, 0)))
    grid = (padded // tb,)

    out = pl.pallas_call(
        ddpg_critic_kernel,
        out_shape=jax.ShapeDtypeStruct((padded, 1), jnp.float32),
        grid=grid,
        in_specs=[
            # x: tiled over batch (double-buffered by Pallas).
            pl.BlockSpec((tb, din), lambda i: (i, 0)),
            # Weights / biases: full shape, constant block index -> resident in
            # VMEM across all grid steps (no per-step re-DMA).
            pl.BlockSpec((din, h1_dim), lambda i: (0, 0)),
            pl.BlockSpec((1, h1_dim), lambda i: (0, 0)),
            pl.BlockSpec((h1_dim, h2_dim), lambda i: (0, 0)),
            pl.BlockSpec((1, h2_dim), lambda i: (0, 0)),
            pl.BlockSpec((1, h2_dim), lambda i: (0, 0)),
            # b3: scalar in SMEM.
            pl.BlockSpec(memory_space=pltpu.MemorySpace.SMEM),
        ],
        out_specs=pl.BlockSpec((tb, 1), lambda i: (i, 0)),
        compiler_params=pltpu.CompilerParams(
            dimension_semantics=("parallel",),      # shard batch across TCs (v7x)
            vmem_limit_bytes=32 * 1024 * 1024,      # safe on v7x's 64 MiB VMEM
        ),
    )(obs_action, w1, b1, w2, b2, w3_row, b3)

    return out[:batch]


# ---------------------------------------------------------------------------
# Deterministic parameter initialization (mirrors DDPGCritic.__init__).
# ---------------------------------------------------------------------------
def _orthogonal(key, rows, cols, gain=1.0):
    """JAX equivalent of torch.nn.init.orthogonal_ for a (rows, cols) matrix."""
    big, small = (rows, cols) if rows >= cols else (cols, rows)
    a = jax.random.normal(key, (big, small), dtype=jnp.float32)
    q, r = jnp.linalg.qr(a)
    d = jnp.sign(jnp.diagonal(r))
    q = q * d[None, :]
    if rows < cols:
        q = q.T
    return gain * q  # shape (rows, cols)


def init_ddpg_critic_params(key, n_observations, n_actions):
    din = n_observations + n_actions
    k1, k2, k3, k4 = jax.random.split(key, 4)

    # PyTorch weight shape is (out, in); we store transposed (in, out).
    w1_pt = _orthogonal(k1, 400, din)                  # (400, din), orthogonal
    w2_pt = _orthogonal(k2, 300, 400)                  # (300, 400), orthogonal
    b1 = jnp.zeros((1, 400), jnp.float32)
    b2 = jnp.zeros((1, 300), jnp.float32)

    # out layer keeps default nn.Linear init: U(-1/sqrt(fan_in), 1/sqrt(fan_in))
    bound = 1.0 / jnp.sqrt(300.0)
    w3_pt = jax.random.uniform(k3, (1, 300), jnp.float32, -bound, bound)
    b3 = jax.random.uniform(k4, (1, 1), jnp.float32, -bound, bound)

    # W1/W2 stored bf16 (MXU-native, halves DMA); w3 row + biases stay f32.
    return (w1_pt.T.astype(jnp.bfloat16), b1,
            w2_pt.T.astype(jnp.bfloat16), b2,
            w3_pt.astype(jnp.float32), b3)          # w3 kept as (1, 300) row


def ddpg_critic_reference(obs_action, params):
    """Pure-JAX reference matching the kernel math (bf16 matmul, f32 accum)."""
    w1, b1, w2, b2, w3_row, b3 = params
    h1 = jnp.dot(obs_action.astype(jnp.bfloat16), w1,
                 preferred_element_type=jnp.float32)
    h1 = jnp.maximum(h1 + b1, 0.0)
    h2 = jnp.dot(h1.astype(jnp.bfloat16), w2,
                 preferred_element_type=jnp.float32)
    h2 = jnp.maximum(h2 + b2, 0.0)
    return jnp.sum(h2 * w3_row, axis=-1, keepdims=True) + b3[0, 0]


if __name__ == "__main__":
    # Small shapes consistent with the module: Box obs dim 8, action dim 4.
    batch, n_obs, n_act = 2, 8, 4
    key = jax.random.PRNGKey(0)
    k_params, k_x = jax.random.split(key)

    params = init_ddpg_critic_params(k_params, n_obs, n_act)
    obs_action = jax.random.normal(k_x, (batch, n_obs + n_act), jnp.float32)

    out = ddpg_critic_forward(obs_action, params)
    out = jax.block_until_ready(out)

    ref = ddpg_critic_reference(obs_action, params)
    assert out.shape == (batch, 1), out.shape
    assert jnp.allclose(out, ref, atol=1e-3, rtol=1e-3), (out, ref)

    print("KERNEL_OK")
</pallas_src>

<mosaic_0001>
module attributes {stable_mosaic.version = 11 : i64} {
  func.func @ddpg_critic_kernel(%arg0: i32, %arg1: memref<8x12xf32, #tpu.memory_space<vmem>>, %arg2: memref<12x400xbf16, #tpu.memory_space<vmem>>, %arg3: memref<1x400xf32, #tpu.memory_space<vmem>>, %arg4: memref<400x300xbf16, #tpu.memory_space<vmem>>, %arg5: memref<1x300xf32, #tpu.memory_space<vmem>>, %arg6: memref<1x300xf32, #tpu.memory_space<vmem>>, %arg7: memref<1x1xf32, #tpu.memory_space<smem>>, %arg8: memref<8x1xf32, #tpu.memory_space<vmem>>) attributes {dimension_semantics = [#tpu.dimension_semantics<parallel>], iteration_bounds = array<i64: 1>, scalar_prefetch = 0 : i64, scratch_operands = 0 : i64, tpu.core_type = #tpu.core_type<tc>, window_params = [{transform_indices = @transform_0, window_bounds = array<i64: 8, 12>}, {pipeline_mode = #tpu.pipeline_mode<synchronous>, transform_indices = @transform_1, window_bounds = array<i64: 12, 400>}, {pipeline_mode = #tpu.pipeline_mode<synchronous>, transform_indices = @transform_2, window_bounds = array<i64: 1, 400>}, {pipeline_mode = #tpu.pipeline_mode<synchronous>, transform_indices = @transform_3, window_bounds = array<i64: 400, 300>}, {pipeline_mode = #tpu.pipeline_mode<synchronous>, transform_indices = @transform_4, window_bounds = array<i64: 1, 300>}, {pipeline_mode = #tpu.pipeline_mode<synchronous>, transform_indices = @transform_5, window_bounds = array<i64: 1, 300>}, {transform_indices = @transform_6, window_bounds = array<i64: 1, 1>}, {transform_indices = @transform_7, window_bounds = array<i64: 8, 1>}]} {
    %c0 = arith.constant 0 : index
    %c0_0 = arith.constant 0 : index
    %0 = vector.load %arg1[%c0, %c0_0] : memref<8x12xf32, #tpu.memory_space<vmem>>, vector<8x12xf32>
    %1 = arith.truncf %0 : vector<8x12xf32> to vector<8x12xbf16>
    %c0_1 = arith.constant 0 : index
    %c0_2 = arith.constant 0 : index
    %2 = vector.load %arg2[%c0_1, %c0_2] : memref<12x400xbf16, #tpu.memory_space<vmem>>, vector<12x400xbf16>
    %cst = arith.constant dense<0.000000e+00> : vector<8x400xf32>
    %3 = tpu.matmul %1, %2, %cst {dimension_numbers = #tpu.dot_dimension_numbers<[1], [0], [0], [1], [0, 0, 1, 1], [], []>} : vector<8x12xbf16>, vector<12x400xbf16>, vector<8x400xf32> -> vector<8x400xf32>
    %c0_3 = arith.constant 0 : index
    %c0_4 = arith.constant 0 : index
    %4 = vector.load %arg3[%c0_3, %c0_4] : memref<1x400xf32, #tpu.memory_space<vmem>>, vector<1x400xf32>
    %5 = vector.broadcast %4 : vector<1x400xf32> to vector<8x400xf32>
    %6 = arith.addf %3, %5 : vector<8x400xf32>
    %cst_5 = arith.constant 0.000000e+00 : f32
    %7 = vector.broadcast %cst_5 : f32 to vector<8x400xf32>
    %8 = arith.maximumf %6, %7 : vector<8x400xf32>
    %9 = arith.truncf %8 : vector<8x400xf32> to vector<8x400xbf16>
    %c0_6 = arith.constant 0 : index
    %c0_7 = arith.constant 0 : index
    %10 = vector.load %arg4[%c0_6, %c0_7] : memref<400x300xbf16, #tpu.memory_space<vmem>>, vector<400x300xbf16>
    %cst_8 = arith.constant dense<0.000000e+00> : vector<8x300xf32>
    %11 = tpu.matmul %9, %10, %cst_8 {dimension_numbers = #tpu.dot_dimension_numbers<[1], [0], [0], [1], [0, 0, 1, 1], [], []>} : vector<8x400xbf16>, vector<400x300xbf16>, vector<8x300xf32> -> vector<8x300xf32>
    %c0_9 = arith.constant 0 : index
    %c0_10 = arith.constant 0 : index
    %12 = vector.load %arg5[%c0_9, %c0_10] : memref<1x300xf32, #tpu.memory_space<vmem>>, vector<1x300xf32>
    %13 = vector.broadcast %12 : vector<1x300xf32> to vector<8x300xf32>
    %14 = arith.addf %11, %13 : vector<8x300xf32>
    %cst_11 = arith.constant 0.000000e+00 : f32
    %15 = vector.broadcast %cst_11 : f32 to vector<8x300xf32>
    %16 = arith.maximumf %14, %15 : vector<8x300xf32>
    %c0_12 = arith.constant 0 : index
    %c0_13 = arith.constant 0 : index
    %17 = vector.load %arg6[%c0_12, %c0_13] : memref<1x300xf32, #tpu.memory_space<vmem>>, vector<1x300xf32>
    %18 = vector.broadcast %17 : vector<1x300xf32> to vector<8x300xf32>
    %19 = arith.mulf %16, %18 : vector<8x300xf32>
    %cst_14 = arith.constant dense<0.000000e+00> : vector<8xf32>
    %20 = vector.multi_reduction <add>, %19, %cst_14 [1] : vector<8x300xf32> to vector<8xf32>
    %21 = vector.shape_cast %20 : vector<8xf32> to vector<8x1xf32>
    %c0_15 = arith.constant 0 : index
    %c0_16 = arith.constant 0 : index
    %22 = memref.load %arg7[%c0_15, %c0_16] : memref<1x1xf32, #tpu.memory_space<smem>>
    %23 = vector.broadcast %22 : f32 to vector<8x1xf32>
    %24 = arith.addf %21, %23 : vector<8x1xf32>
    %c0_17 = arith.constant 0 : index
    %c0_18 = arith.constant 0 : index
    %25 = vector.load %arg8[%c0_17, %c0_18] : memref<8x1xf32, #tpu.memory_space<vmem>>, vector<8x1xf32>
    tpu.vector_store %arg8[%c0_17, %c0_18], %24 {strides = array<i32>} : memref<8x1xf32, #tpu.memory_space<vmem>>, vector<8x1xf32>,
    return
  }
  func.func @transform_0(%arg0: i32) -> (i32, i32) {
    %c0_i32 = arith.constant 0 : i32
    %c0_i32_0 = arith.constant 0 : i32
    return %arg0, %c0_i32 : i32, i32
  }
  func.func @transform_1(%arg0: i32) -> (i32, i32) {
    %c0_i32 = arith.constant 0 : i32
    %c0_i32_0 = arith.constant 0 : i32
    %c0_i32_1 = arith.constant 0 : i32
    return %c0_i32, %c0_i32_0 : i32, i32
  }
  func.func @transform_2(%arg0: i32) -> (i32, i32) {
    %c0_i32 = arith.constant 0 : i32
    %c0_i32_0 = arith.constant 0 : i32
    %c0_i32_1 = arith.constant 0 : i32
    return %c0_i32, %c0_i32_0 : i32, i32
  }
  func.func @transform_3(%arg0: i32) -> (i32, i32) {
    %c0_i32 = arith.constant 0 : i32
    %c0_i32_0 = arith.constant 0 : i32
    %c0_i32_1 = arith.constant 0 : i32
    return %c0_i32, %c0_i32_0 : i32, i32
  }
  func.func @transform_4(%arg0: i32) -> (i32, i32) {
    %c0_i32 = arith.constant 0 : i32
    %c0_i32_0 = arith.constant 0 : i32
    %c0_i32_1 = arith.constant 0 : i32
    return %c0_i32, %c0_i32_0 : i32, i32
  }
  func.func @transform_5(%arg0: i32) -> (i32, i32) {
    %c0_i32 = arith.constant 0 : i32
    %c0_i32_0 = arith.constant 0 : i32
    %c0_i32_1 = arith.constant 0 : i32
    return %c0_i32, %c0_i32_0 : i32, i32
  }
  func.func @transform_6(%arg0: i32) -> (i32, i32) {
    %c0_i32 = arith.constant 0 : i32
    %c0_i32_0 = arith.constant 0 : i32
    %c0_i32_1 = arith.constant 0 : i32
    return %c0_i32, %c0_i32_0 : i32, i32
  }
  func.func @transform_7(%arg0: i32) -> (i32, i32) {
    %c0_i32 = arith.constant 0 : i32
    %c0_i32_0 = arith.constant 0 : i32
    return %arg0, %c0_i32 : i32, i32
  }
}

</mosaic_0001>

<llo_original>
// kernel: tpu_custom_call.1
$region0: #{tpu_custom_call.1}
  #allocation0 [shape = 'u32[]', space=smem, size = 0x4, offset = 0x4, fixed_abs, tag = 'smem constant byte address 0x4 - core index']
  #allocation1 [shape = 'u32[144,128]{1,0:T(1,128)}', space=vmem, size = 0x12000, scoped, tag = 'internal scratch']
  #allocation2 [shape = 'f32[1,1]{1,0:T(1,128)S(6)}', space=smem, size = 0x200, scoped, tag = 'scoped memory for tpu_custom_call.1']
  %s0 = inlined_call_operand.hbm [shape: f32[8,12], index: 0, kind: input, shape index: {}]
  %s1 = inlined_call_operand.hbm [shape: bf16[12,400], index: 1, kind: input, shape index: {}]
  %s2 = inlined_call_operand.vmem [shape: f32[1,400], index: 2, kind: input, shape index: {}]
  %s3 = inlined_call_operand.hbm [shape: bf16[400,300], index: 3, kind: input, shape index: {}]
  %s4 = inlined_call_operand.vmem [shape: f32[1,300], index: 4, kind: input, shape index: {}]
  %s5 = inlined_call_operand.vmem [shape: f32[1,300], index: 5, kind: input, shape index: {}]
  %s6 = inlined_call_operand.<no memory space> [shape: f32[1,1], index: 6, kind: input, shape index: {}]
  %s7 = inlined_call_operand.vmem [shape: f32[8,1], index: 7, kind: output, shape index: {}]
  %s8 = sld [smem:[#allocation0]]
  $region50: #{tpu_custom_call.1} parent=0
    _
  %s10 = ssub.s32 1, %s8
  %s11 = scalar_select 0, %s10, %s8
  %12 = sst [smem:[#allocation2]] %s6
  $region1: #{tpu_custom_call.1} parent=0
    #allocation3 [shape = 'u8[4096]{0}', space=vmem, size = 0x1000, scoped, tag = 'input window, operand 0, single buffered']
    #allocation4 [shape = 's32[1]{0}', space=sflag, size = 0x4, scoped, tag = 'scoped memory for tpu_custom_call.1']
    #allocation5 [shape = 'u8[16384]{0}', space=vmem, size = 0x4000, scoped, tag = 'input window, operand 1, single buffered']
    #allocation6 [shape = 's32[1]{0}', space=sflag, size = 0x4, scoped, tag = 'scoped memory for tpu_custom_call.1']
    #allocation7 [shape = 'u8[307200]{0}', space=vmem, size = 0x4b000, scoped, tag = 'input window, operand 3, single buffered']
    %13 = vsyncpa [#allocation4], 0
    %14 = vsyncpa [#allocation6], 0
    // Predicated region
    $region2: #{tpu_custom_call.1} parent=1 // pred_check
      _
    $region3: #{tpu_custom_call.1} parent=1 // pred_check_branch
      %16 = sbr.rel (0) target = $region5
    $region4: #{tpu_custom_call.1} parent=1 // pred_region
      %s18 = ssub.s32 128, 128
      %19 = vsyncadd [#allocation4], %s18
      %s21 = sshll.u32 [#allocation3], 4
      %s22 = int_to_ptr.vmem [resolvable:$true] %s21
      %24 = dma.hbm_to_vmem [thread:$0]  %s0, 128, %s22, [#allocation4]
    $region5: #{tpu_custom_call.1} parent=1 // pred_fallthru
      _
    // Predicated region
    $region6: #{tpu_custom_call.1} parent=1 // pred_check
      _
    $region7: #{tpu_custom_call.1} parent=1 // pred_check_branch
      %26 = sbr.rel (0) target = $region9
    $region8: #{tpu_custom_call.1} parent=1 // pred_region
      %s28 = ssub.s32 512, 512
      %29 = vsyncadd [#allocation6], %s28
      %s30 = sshll.u32 [#allocation5], 4
      %s31 = int_to_ptr.vmem [resolvable:$true] %s30
      %36 = dma.hbm_to_vmem [thread:$0]  %s1, 512, %s31, [#allocation6], 256, 256, 16
    $region9: #{tpu_custom_call.1} parent=1 // pred_fallthru
      _
    // Predicated region
    $region10: #{tpu_custom_call.1} parent=1 // pred_check
      _
    $region11: #{tpu_custom_call.1} parent=1 // pred_check_branch
      %38 = sbr.rel (0) target = $region13
    $region12: #{tpu_custom_call.1} parent=1 // pred_region
      _
    $region13: #{tpu_custom_call.1} parent=1 // pred_fallthru
      _
    // Predicated region
    $region14: #{tpu_custom_call.1} parent=1 // pred_check
      _
    $region15: #{tpu_custom_call.1} parent=1 // pred_check_branch
      %40 = sbr.rel (0) target = $region17
    $region16: #{tpu_custom_call.1} parent=1 // pred_region
      %s42 = ssub.s32 9600, 9600
      %43 = vsyncadd [#allocation6], %s42
      %s44 = sshll.u32 [#allocation7], 4
      %s45 = int_to_ptr.vmem [resolvable:$true] %s44
      %50 = dma.hbm_to_vmem [thread:$0]  %s3, 9600, %s45, [#allocation6], 192, 192, 12
    $region17: #{tpu_custom_call.1} parent=1 // pred_fallthru
      _
    // Predicated region
    $region18: #{tpu_custom_call.1} parent=1 // pred_check
      _
    $region19: #{tpu_custom_call.1} parent=1 // pred_check_branch
      %52 = sbr.rel (0) target = $region21
    $region20: #{tpu_custom_call.1} parent=1 // pred_region
      _
    $region21: #{tpu_custom_call.1} parent=1 // pred_fallthru
      _
    // Predicated region
    $region22: #{tpu_custom_call.1} parent=1 // pred_check
      _
    $region23: #{tpu_custom_call.1} parent=1 // pred_check_branch
      %54 = sbr.rel (0) target = $region25
    $region24: #{tpu_custom_call.1} parent=1 // pred_region
      _
    $region25: #{tpu_custom_call.1} parent=1 // pred_fallthru
      _
    // Predicated region
    $region26: #{tpu_custom_call.1} parent=1 // pred_check
      _
    $region27: #{tpu_custom_call.1} parent=1 // pred_check_branch
      %56 = sbr.rel (0) target = $region29
    $region28: #{tpu_custom_call.1} parent=1 // pred_region
      _
    $region29: #{tpu_custom_call.1} parent=1 // pred_fallthru
      _
    // Predicated region
    $region30: #{tpu_custom_call.1} parent=1 // pred_check
      _
    $region31: #{tpu_custom_call.1} parent=1 // pred_check_branch
      %58 = sbr.rel (0) target = $region33
    $region32: #{tpu_custom_call.1} parent=1 // pred_region
      %59 = dma.done [#allocation4], 128
    $region33: #{tpu_custom_call.1} parent=1 // pred_fallthru
      _
    // Predicated region
    $region34: #{tpu_custom_call.1} parent=1 // pred_check
      _
    $region35: #{tpu_custom_call.1} parent=1 // pred_check_branch
      %61 = sbr.rel (0) target = $region37
    $region36: #{tpu_custom_call.1} parent=1 // pred_region
      %62 = dma.done [#allocation6], 512
    $region37: #{tpu_custom_call.1} parent=1 // pred_fallthru
      _
    // Predicated region
    $region38: #{tpu_custom_call.1} parent=1 // pred_check
      _
    $region39: #{tpu_custom_call.1} parent=1 // pred_check_branch
      %64 = sbr.rel (0) target = $region41
    $region40: #{tpu_custom_call.1} parent=1 // pred_region
      %65 = dma.done [#allocation6], 9600
    $region41: #{tpu_custom_call.1} parent=1 // pred_fallthru
      _
    %v67 = vld [vmem:[#allocation3] sm:$0xff]
    %v68 = vpack.c.bf16 %v67, %v67
    %v69 = vld [vmem:[#allocation5] sm:$0xff]
    %v70 = vld [vmem:[#allocation5 + $0x8] sm:$0xff]
    %v71 = vld [vmem:[#allocation5 + $0x10] sm:$0x33]
    %v72 = vld [vmem:[#allocation5 + $0x18] sm:$0x33]
    %v73 = vld [vmem:[%s2] sm:$0xf]
    %v75 = vlaneseq
    %v76 = vshrl.u32 %v75, 7
    %v77 = vsub.s32 0, %v76
    %v78 = vrot.slane %v73, %v77
    %v79 = vlaneseq
    %v80 = vshrl.u32 %v79, 7
    %v81 = vsub.s32 1, %v80
    %v82 = vrot.slane %v73, %v81
    %v83 = vlaneseq
    %v84 = vshrl.u32 %v83, 7
    %v85 = vsub.s32 2, %v84
    %v86 = vrot.slane %v73, %v85
    %v87 = vlaneseq
    %v88 = vshrl.u32 %v87, 7
    %v89 = vsub.s32 3, %v88
    %v90 = vrot.slane %v73, %v89
    %v99 = vunpack.c.l.b16 %v69
    %v100 = vunpack.c.h.b16 %v69
    %v101 = vunpack.c.l.b16 %v70
    %v102 = vunpack.c.h.b16 %v70
    %v103 = vunpack.c.l.b16 %v71
    %v104 = vunpack.c.h.b16 %v71
    %v105 = vunpack.c.l.b16 %v72
    %v106 = vunpack.c.h.b16 %v72
    %v107 = vpack.c.b16 %v103, %v99
    %v108 = vpack.c.b16 %v104, %v100
    %v109 = vpack.c.b16 %v105, %v101
    %v110 = vpack.c.b16 %v106, %v102
    %vm111 = vcmask 97280
    %v113 = vsel %vm111, %v68, 0
    %vm115 = vcmask 1045504
    %v117 = vsel %vm115, %v107, 0
    %v120 = vsel %vm115, %v108, 0
    %v123 = vsel %vm115, %v109, 0
    %v126 = vsel %vm115, %v110, 0
    %128 = vmatprep.subr.bf16.mxu0 %v120
    %129 = vmatpush1.bf16.msra.mxu0 %v117
    %130 = vmatprep.subr.bf16.mxu0 0
    %131 = vmatpush1.bf16.msra.mxu0 0
    %132 = vmatprep.subr.bf16.mxu0 0
    %133 = vmatpush1.bf16.msra.mxu0 0
    %134 = vmatprep.subr.bf16.mxu0 0
    %135 = vmatpush1.bf16.msra.mxu0 0
    %136 = vmatprep.subr.bf16.mxu0 0
    %137 = vmatpush1.bf16.msra.mxu0 0
    %138 = vmatprep.subr.bf16.mxu0 0
    %139 = vmatpush1.bf16.msra.mxu0 0
    %140 = vmatprep.subr.bf16.mxu0 0
    %141 = vmatpush1.bf16.msra.mxu0 0
    %142 = vmatprep.subr.bf16.mxu0 0
    %143 = vmatpush1.bf16.msra.mxu0 0
    %144 = vmatprep.subr.bf16.mxu0 0
    %145 = vmatpush1.bf16.msra.mxu0 0
    %146 = vmatprep.subr.bf16.mxu0 0
    %147 = vmatpush1.bf16.msra.mxu0 0
    %148 = vmatprep.subr.bf16.mxu0 0
    %149 = vmatpush1.bf16.msra.mxu0 0
    %150 = vmatprep.subr.bf16.mxu0 0
    %151 = vmatpush1.bf16.msra.mxu0 0
    %152 = vmatprep.subr.bf16.mxu0 0
    %153 = vmatpush1.bf16.msra.mxu0 0
    %154 = vmatprep.subr.bf16.mxu0 0
    %155 = vmatpush1.bf16.msra.mxu0 0
    %156 = vmatprep.subr.bf16.mxu0 0
    %157 = vmatpush1.bf16.msra.mxu0 0
    %158 = vmatprep.subr.bf16.mxu0 0
    %159 = vmatpush1.bf16.msra.mxu0 0
    %160 = vmatprep.mubr.bf16.mxu0 0
    %161 = vmatmul.mubr.bf16.gmra.mrb[0].mxu0 %v113
    %v162 = vpop.f32.mrb[0].mxu0
    %v163 = vadd.f32 %v78, %v162
    %v164 = vpop.f32.mrb[0].mxu0
    %v165 = vadd.f32 %v82, %v164
    %v166 = vpop.f32.mrb[0].mxu0
    %v167 = vpop.f32.mrb[0].mxu0
    %168 = vdwg.mxu0
    %169 = vmatprep.subr.bf16.mxu0 %v126
    %170 = vmatpush1.bf16.msra.mxu0 %v123
    %171 = vmatprep.subr.bf16.mxu0 0
    %172 = vmatpush1.bf16.msra.mxu0 0
    %173 = vmatprep.subr.bf16.mxu0 0
    %174 = vmatpush1.bf16.msra.mxu0 0
    %175 = vmatprep.subr.bf16.mxu0 0
    %176 = vmatpush1.bf16.msra.mxu0 0
    %177 = vmatprep.subr.bf16.mxu0 0
    %178 = vmatpush1.bf16.msra.mxu0 0
    %179 = vmatprep.subr.bf16.mxu0 0
    %180 = vmatpush1.bf16.msra.mxu0 0
    %181 = vmatprep.subr.bf16.mxu0 0
    %182 = vmatpush1.bf16.msra.mxu0 0
    %183 = vmatprep.subr.bf16.mxu0 0
    %184 = vmatpush1.bf16.msra.mxu0 0
    %185 = vmatprep.subr.bf16.mxu0 0
    %186 = vmatpush1.bf16.msra.mxu0 0
    %187 = vmatprep.subr.bf16.mxu0 0
    %188 = vmatpush1.bf16.msra.mxu0 0
    %189 = vmatprep.subr.bf16.mxu0 0
    %190 = vmatpush1.bf16.msra.mxu0 0
    %191 = vmatprep.subr.bf16.mxu0 0
    %192 = vmatpush1.bf16.msra.mxu0 0
    %193 = vmatprep.subr.bf16.mxu0 0
    %194 = vmatpush1.bf16.msra.mxu0 0
    %195 = vmatprep.subr.bf16.mxu0 0
    %196 = vmatpush1.bf16.msra.mxu0 0
    %197 = vmatprep.subr.bf16.mxu0 0
    %198 = vmatpush1.bf16.msra.mxu0 0
    %199 = vmatprep.subr.bf16.mxu0 0
    %200 = vmatpush1.bf16.msra.mxu0 0
    %201 = vmatprep.mubr.bf16.mxu0 0
    %202 = vmatmul.mubr.bf16.gmra.mrb[0].mxu0 %v113
    %v203 = vpop.f32.mrb[0].mxu0
    %v204 = vadd.f32 %v86, %v203
    %v205 = vpop.f32.mrb[0].mxu0
    %v206 = vadd.f32 %v90, %v205
    %v207 = vpop.f32.mrb[0].mxu0
    %v208 = vpop.f32.mrb[0].mxu0
    %209 = vdwg.mxu0
    %v210 = vmax.f32 %v163, 0.0
    %v211 = vmax.f32 %v165, 0.0
    %v212 = vmax.f32 %v204, 0.0
    %v213 = vmax.f32 %v206, 0.0
    %v214 = vpack.c.bf16 %v210, %v210
    %v215 = vpack.c.bf16 %v211, %v211
    %v216 = vpack.c.bf16 %v212, %v212
    %v217 = vpack.c.bf16 %v213, %v213
    %v218 = vld [vmem:[#allocation7] sm:$0xff]
    %v219 = vld [vmem:[#allocation7 + $0x8] sm:$0xf]
    %v220 = vld [vmem:[#allocation7 + $0xc] sm:$0xff]
    %v221 = vld [vmem:[#allocation7 + $0x14] sm:$0xf]
    %v222 = vld [vmem:[#allocation7 + $0x18] sm:$0xff]
    %v223 = vld [vmem:[#allocation7 + $0x20] sm:$0xf]
    %v224 = vld [vmem:[#allocation7 + $0x24] sm:$0xff]
    %v225 = vld [vmem:[#allocation7 + $0x2c] sm:$0xf]
    %v226 = vld [vmem:[#allocation7 + $0x30] sm:$0xff]
    %v227 = vld [vmem:[#allocation7 + $0x38] sm:$0xf]
    %v228 = vld [vmem:[#allocation7 + $0x3c] sm:$0xff]
    %v229 = vld [vmem:[#allocation7 + $0x44] sm:$0xf]
    %v230 = vld [vmem:[#allocation7 + $0x48] sm:$0xff]
    %v231 = vld [vmem:[#allocation7 + $0x50] sm:$0xf]
    %v232 = vld [vmem:[#allocation7 + $0x54] sm:$0xff]
    %v233 = vld [vmem:[#allocation7 + $0x5c] sm:$0xf]
    %v234 = vld [vmem:[#allocation7 + $0x60] sm:$0xff]
    %v235 = vld [vmem:[#allocation7 + $0x68] sm:$0xf]
    %v236 = vld [vmem:[#allocation7 + $0x6c] sm:$0xff]
    %v237 = vld [vmem:[#allocation7 + $0x74] sm:$0xf]
    %v238 = vld [vmem:[#allocation7 + $0x78] sm:$0xff]
    %v239 = vld [vmem:[#allocation7 + $0x80] sm:$0xf]
    %v240 = vld [vmem:[#allocation7 + $0x84] sm:$0xff]
    %v241 = vld [vmem:[#allocation7 + $0x8c] sm:$0xf]
    %v242 = vld [vmem:[#allocation7 + $0x90] sm:$0xff]
    %v243 = vld [vmem:[#allocation7 + $0x98] sm:$0xf]
    %v244 = vld [vmem:[#allocation7 + $0x9c] sm:$0xff]
    %v245 = vld [vmem:[#allocation7 + $0xa4] sm:$0xf]
    %v246 = vld [vmem:[#allocation7 + $0xa8] sm:$0xff]
    %v247 = vld [vmem:[#allocation7 + $0xb0] sm:$0xf]
    %v248 = vld [vmem:[#allocation7 + $0xb4] sm:$0xff]
    %v249 = vld [vmem:[#allocation7 + $0xbc] sm:$0xf]
    %v250 = vld [vmem:[#allocation7 + $0xc0] sm:$0xff]
    %v251 = vld [vmem:[#allocation7 + $0xc8] sm:$0xf]
    %v252 = vld [vmem:[#allocation7 + $0xcc] sm:$0xff]
    %v253 = vld [vmem:[#allocation7 + $0xd4] sm:$0xf]
    %v254 = vld [vmem:[#allocation7 + $0xd8] sm:$0xff]
    %v255 = vld [vmem:[#allocation7 + $0xe0] sm:$0xf]
    %v256 = vld [vmem:[#allocation7 + $0xe4] sm:$0xff]
    %v257 = vld [vmem:[#allocation7 + $0xec] sm:$0xf]
    %v258 = vld [vmem:[#allocation7 + $0xf0] sm:$0xff]
    %v259 = vld [vmem:[#allocation7 + $0xf8] sm:$0xf]
    %v260 = vld [vmem:[#allocation7 + $0xfc] sm:$0xff]
    %v261 = vld [vmem:[#allocation7 + $0x104] sm:$0xf]
    %v262 = vld [vmem:[#allocation7 + $0x108] sm:$0xff]
    %v263 = vld [vmem:[#allocation7 + $0x110] sm:$0xf]
    %v264 = vld [vmem:[#allocation7 + $0x114] sm:$0xff]
    %v265 = vld [vmem:[#allocation7 + $0x11c] sm:$0xf]
    %v266 = vld [vmem:[#allocation7 + $0x120] sm:$0xff]
    %v267 = vld [vmem:[#allocation7 + $0x128] sm:$0xf]
    %v268 = vld [vmem:[#allocation7 + $0x12c] sm:$0xff]
    %v269 = vld [vmem:[#allocation7 + $0x134] sm:$0xf]
    %v270 = vld [vmem:[#allocation7 + $0x138] sm:$0xff]
    %v271 = vld [vmem:[#allocation7 + $0x140] sm:$0xf]
    %v272 = vld [vmem:[#allocation7 + $0x144] sm:$0xff]
    %v273 = vld [vmem:[#allocation7 + $0x14c] sm:$0xf]
    %v274 = vld [vmem:[#allocation7 + $0x150] sm:$0xff]
    %v275 = vld [vmem:[#allocation7 + $0x158] sm:$0xf]
    %v276 = vld [vmem:[#allocation7 + $0x15c] sm:$0xff]
    %v277 = vld [vmem:[#allocation7 + $0x164] sm:$0xf]
    %v278 = vld [vmem:[#allocation7 + $0x168] sm:$0xff]
    %v279 = vld [vmem:[#allocation7 + $0x170] sm:$0xf]
    %v280 = vld [vmem:[#allocation7 + $0x174] sm:$0xff]
    %v281 = vld [vmem:[#allocation7 + $0x17c] sm:$0xf]
    %v282 = vld [vmem:[#allocation7 + $0x180] sm:$0xff]
    %v283 = vld [vmem:[#allocation7 + $0x188] sm:$0xf]
    %v284 = vld [vmem:[#allocation7 + $0x18c] sm:$0xff]
    %v285 = vld [vmem:[#allocation7 + $0x194] sm:$0xf]
    %v286 = vld [vmem:[#allocation7 + $0x198] sm:$0xff]
    %v287 = vld [vmem:[#allocation7 + $0x1a0] sm:$0xf]
    %v288 = vld [vmem:[#allocation7 + $0x1a4] sm:$0xff]
    %v289 = vld [vmem:[#allocation7 + $0x1ac] sm:$0xf]
    %v290 = vld [vmem:[#allocation7 + $0x1b0] sm:$0xff]
    %v291 = vld [vmem:[#allocation7 + $0x1b8] sm:$0xf]
    %v292 = vld [vmem:[#allocation7 + $0x1bc] sm:$0xff]
    %v293 = vld [vmem:[#allocation7 + $0x1c4] sm:$0xf]
    %v294 = vld [vmem:[#allocation7 + $0x1c8] sm:$0xff]
    %v295 = vld [vmem:[#allocation7 + $0x1d0] sm:$0xf]
    %v296 = vld [vmem:[#allocation7 + $0x1d4] sm:$0xff]
    %v297 = vld [vmem:[#allocation7 + $0x1dc] sm:$0xf]
    %v298 = vld [vmem:[#allocation7 + $0x1e0] sm:$0xff]
    %v299 = vld [vmem:[#allocation7 + $0x1e8] sm:$0xf]
    %v300 = vld [vmem:[#allocation7 + $0x1ec] sm:$0xff]
    %v301 = vld [vmem:[#allocation7 + $0x1f4] sm:$0xf]
    %v302 = vld [vmem:[#allocation7 + $0x1f8] sm:$0xff]
    %v303 = vld [vmem:[#allocation7 + $0x200] sm:$0xf]
    %v304 = vld [vmem:[#allocation7 + $0x204] sm:$0xff]
    %v305 = vld [vmem:[#allocation7 + $0x20c] sm:$0xf]
    %v306 = vld [vmem:[#allocation7 + $0x210] sm:$0xff]
    %v307 = vld [vmem:[#allocation7 + $0x218] sm:$0xf]
    %v308 = vld [vmem:[#allocation7 + $0x21c] sm:$0xff]
    %v309 = vld [vmem:[#allocation7 + $0x224] sm:$0xf]
    %v310 = vld [vmem:[#allocation7 + $0x228] sm:$0xff]
    %v311 = vld [vmem:[#allocation7 + $0x230] sm:$0xf]
    %v312 = vld [vmem:[#allocation7 + $0x234] sm:$0xff]
    %v313 = vld [vmem:[#allocation7 + $0x23c] sm:$0xf]
    %v314 = vld [vmem:[#allocation7 + $0x240] sm:$0xff]
    %v315 = vld [vmem:[#allocation7 + $0x248] sm:$0xf]
    %v316 = vld [vmem:[#allocation7 + $0x24c] sm:$0xff]
    %v317 = vld [vmem:[#allocation7 + $0x254] sm:$0xf]
    %v318 = vld [vmem:[%s4] sm:$0x7]
    %v320 = vlaneseq
    %v321 = vshrl.u32 %v320, 7
    %v322 = vsub.s32 0, %v321
    %v323 = vrot.slane %v318, %v322
    %v324 = vlaneseq
    %v325 = vshrl.u32 %v324, 7
    %v326 = vsub.s32 1, %v325
    %v327 = vrot.slane %v318, %v326
    %v328 = vlaneseq
    %v329 = vshrl.u32 %v328, 7
    %v330 = vsub.s32 2, %v329
    %v331 = vrot.slane %v318, %v330
    %v435 = vunpack.c.l.b16 %v218
    %v436 = vunpack.c.h.b16 %v218
    %v437 = vunpack.c.l.b16 %v219
    %v438 = vunpack.c.l.b16 %v220
    %v439 = vunpack.c.h.b16 %v220
    %v440 = vunpack.c.l.b16 %v221
    %v441 = vunpack.c.l.b16 %v222
    %v442 = vunpack.c.h.b16 %v222
    %v443 = vunpack.c.l.b16 %v223
    %v444 = vunpack.c.l.b16 %v224
    %v445 = vunpack.c.h.b16 %v224
    %v446 = vunpack.c.l.b16 %v225
    %v447 = vunpack.c.l.b16 %v226
    %v448 = vunpack.c.h.b16 %v226
    %v449 = vunpack.c.l.b16 %v227
    %v450 = vunpack.c.l.b16 %v228
    %v451 = vunpack.c.h.b16 %v228
    %v452 = vunpack.c.l.b16 %v229
    %v453 = vunpack.c.l.b16 %v230
    %v454 = vunpack.c.h.b16 %v230
    %v455 = vunpack.c.l.b16 %v231
    %v456 = vunpack.c.l.b16 %v232
    %v457 = vunpack.c.h.b16 %v232
    %v458 = vunpack.c.l.b16 %v233
    %v459 = vunpack.c.l.b16 %v234
    %v460 = vunpack.c.h.b16 %v234
    %v461 = vunpack.c.l.b16 %v235
    %v462 = vunpack.c.l.b16 %v236
    %v463 = vunpack.c.h.b16 %v236
    %v464 = vunpack.c.l.b16 %v237
    %v465 = vunpack.c.l.b16 %v238
    %v466 = vunpack.c.h.b16 %v238
    %v467 = vunpack.c.l.b16 %v239
    %v468 = vunpack.c.l.b16 %v240
    %v469 = vunpack.c.h.b16 %v240
    %v470 = vunpack.c.l.b16 %v241
    %v471 = vunpack.c.l.b16 %v242
    %v472 = vunpack.c.h.b16 %v242
    %v473 = vunpack.c.l.b16 %v243
    %v474 = vunpack.c.l.b16 %v244
    %v475 = vunpack.c.h.b16 %v244
    %v476 = vunpack.c.l.b16 %v245
    %v477 = vunpack.c.l.b16 %v246
    %v478 = vunpack.c.h.b16 %v246
    %v479 = vunpack.c.l.b16 %v247
    %v480 = vunpack.c.l.b16 %v248
    %v481 = vunpack.c.h.b16 %v248
    %v482 = vunpack.c.l.b16 %v249
    %v483 = vunpack.c.l.b16 %v250
    %v484 = vunpack.c.h.b16 %v250
    %v485 = vunpack.c.l.b16 %v251
    %v486 = vunpack.c.l.b16 %v252
    %v487 = vunpack.c.h.b16 %v252
    %v488 = vunpack.c.l.b16 %v253
    %v489 = vunpack.c.l.b16 %v254
    %v490 = vunpack.c.h.b16 %v254
    %v491 = vunpack.c.l.b16 %v255
    %v492 = vunpack.c.l.b16 %v256
    %v493 = vunpack.c.h.b16 %v256
    %v494 = vunpack.c.l.b16 %v257
    %v495 = vunpack.c.l.b16 %v258
    %v496 = vunpack.c.h.b16 %v258
    %v497 = vunpack.c.l.b16 %v259
    %v498 = vunpack.c.l.b16 %v260
    %v499 = vunpack.c.h.b16 %v260
    %v500 = vunpack.c.l.b16 %v261
    %v501 = vunpack.c.l.b16 %v262
    %v502 = vunpack.c.h.b16 %v262
    %v503 = vunpack.c.l.b16 %v263
    %v504 = vunpack.c.l.b16 %v264
    %v505 = vunpack.c.h.b16 %v264
    %v506 = vunpack.c.l.b16 %v265
    %v507 = vunpack.c.l.b16 %v266
    %v508 = vunpack.c.h.b16 %v266
    %v509 = vunpack.c.l.b16 %v267
    %v510 = vunpack.c.l.b16 %v268
    %v511 = vunpack.c.h.b16 %v268
    %v512 = vunpack.c.l.b16 %v269
    %v513 = vunpack.c.l.b16 %v270
    %v514 = vunpack.c.h.b16 %v270
    %v515 = vunpack.c.l.b16 %v271
    %v516 = vunpack.c.l.b16 %v272
    %v517 = vunpack.c.h.b16 %v272
    %v518 = vunpack.c.l.b16 %v273
    %v519 = vunpack.c.l.b16 %v274
    %v520 = vunpack.c.h.b16 %v274
    %v521 = vunpack.c.l.b16 %v275
    %v522 = vunpack.c.l.b16 %v276
    %v523 = vunpack.c.h.b16 %v276
    %v524 = vunpack.c.l.b16 %v277
    %v525 = vunpack.c.l.b16 %v278
    %v526 = vunpack.c.h.b16 %v278
    %v527 = vunpack.c.l.b16 %v279
    %v528 = vunpack.c.l.b16 %v280
    %v529 = vunpack.c.h.b16 %v280
    %v530 = vunpack.c.l.b16 %v281
    %v531 = vunpack.c.l.b16 %v282
    %v532 = vunpack.c.h.b16 %v282
    %v533 = vunpack.c.l.b16 %v283
    %v534 = vunpack.c.l.b16 %v284
    %v535 = vunpack.c.h.b16 %v284
    %v536 = vunpack.c.l.b16 %v285
    %v537 = vunpack.c.l.b16 %v286
    %v538 = vunpack.c.h.b16 %v286
    %v539 = vunpack.c.l.b16 %v287
    %v540 = vunpack.c.l.b16 %v288
    %v541 = vunpack.c.h.b16 %v288
    %v542 = vunpack.c.l.b16 %v289
    %v543 = vunpack.c.l.b16 %v290
    %v544 = vunpack.c.h.b16 %v290
    %v545 = vunpack.c.l.b16 %v291
    %v546 = vunpack.c.l.b16 %v292
    %v547 = vunpack.c.h.b16 %v292
    %v548 = vunpack.c.l.b16 %v293
    %v549 = vunpack.c.l.b16 %v294
    %v550 = vunpack.c.h.b16 %v294
    %v551 = vunpack.c.l.b16 %v295
    %v552 = vunpack.c.l.b16 %v296
    %v553 = vunpack.c.h.b16 %v296
    %v554 = vunpack.c.l.b16 %v297
    %v555 = vunpack.c.l.b16 %v298
    %v556 = vunpack.c.h.b16 %v298
    %v557 = vunpack.c.l.b16 %v299
    %v558 = vunpack.c.l.b16 %v300
    %v559 = vunpack.c.h.b16 %v300
    %v560 = vunpack.c.l.b16 %v301
    %v561 = vunpack.c.l.b16 %v302
    %v562 = vunpack.c.h.b16 %v302
    %v563 = vunpack.c.l.b16 %v303
    %v564 = vunpack.c.l.b16 %v304
    %v565 = vunpack.c.h.b16 %v304
    %v566 = vunpack.c.l.b16 %v305
    %v567 = vunpack.c.l.b16 %v306
    %v568 = vunpack.c.h.b16 %v306
    %v569 = vunpack.c.l.b16 %v307
    %v570 = vunpack.c.l.b16 %v308
    %v571 = vunpack.c.h.b16 %v308
    %v572 = vunpack.c.l.b16 %v309
    %v573 = vunpack.c.l.b16 %v310
    %v574 = vunpack.c.h.b16 %v310
    %v575 = vunpack.c.l.b16 %v311
    %v576 = vunpack.c.l.b16 %v312
    %v577 = vunpack.c.h.b16 %v312
    %v578 = vunpack.c.l.b16 %v313
    %v579 = vunpack.c.l.b16 %v314
    %v580 = vunpack.c.h.b16 %v314
    %v581 = vunpack.c.l.b16 %v315
    %v582 = vunpack.c.l.b16 %v316
    %v583 = vunpack.c.h.b16 %v316
    %v584 = vunpack.c.l.b16 %v317
    %v585 = vpack.c.b16 %v438, %v435
    %v586 = vpack.c.b16 %v439, %v436
    %v587 = vpack.c.b16 %v440, %v437
    %v588 = vpack.c.b16 %v444, %v441
    %v589 = vpack.c.b16 %v445, %v442
    %v590 = vpack.c.b16 %v446, %v443
    %v591 = vpack.c.b16 %v450, %v447
    %v592 = vpack.c.b16 %v451, %v448
    %v593 = vpack.c.b16 %v452, %v449
    %v594 = vpack.c.b16 %v456, %v453
    %v595 = vpack.c.b16 %v457, %v454
    %v596 = vpack.c.b16 %v458, %v455
    %v597 = vpack.c.b16 %v462, %v459
    %v598 = vpack.c.b16 %v463, %v460
    %v599 = vpack.c.b16 %v464, %v461
    %v600 = vpack.c.b16 %v468, %v465
    %v601 = vpack.c.b16 %v469, %v466
    %v602 = vpack.c.b16 %v470, %v467
    %v603 = vpack.c.b16 %v474, %v471
    %v604 = vpack.c.b16 %v475, %v472
    %v605 = vpack.c.b16 %v476, %v473
    %v606 = vpack.c.b16 %v480, %v477
    %v607 = vpack.c.b16 %v481, %v478
    %v608 = vpack.c.b16 %v482, %v479
    %v609 = vpack.c.b16 %v486, %v483
    %v610 = vpack.c.b16 %v487, %v484
    %v611 = vpack.c.b16 %v488, %v485
    %v612 = vpack.c.b16 %v492, %v489
    %v613 = vpack.c.b16 %v493, %v490
    %v614 = vpack.c.b16 %v494, %v491
    %v615 = vpack.c.b16 %v498, %v495
    %v616 = vpack.c.b16 %v499, %v496
    %v617 = vpack.c.b16 %v500, %v497
    %v618 = vpack.c.b16 %v504, %v501
    %v619 = vpack.c.b16 %v505, %v502
    %v620 = vpack.c.b16 %v506, %v503
    %v621 = vpack.c.b16 %v510, %v507
    %v622 = vpack.c.b16 %v511, %v508
    %v623 = vpack.c.b16 %v512, %v509
    %v624 = vpack.c.b16 %v516, %v513
    %v625 = vpack.c.b16 %v517, %v514
    %v626 = vpack.c.b16 %v518, %v515
    %v627 = vpack.c.b16 %v522, %v519
    %v628 = vpack.c.b16 %v523, %v520
    %v629 = vpack.c.b16 %v524, %v521
    %v630 = vpack.c.b16 %v528, %v525
    %v631 = vpack.c.b16 %v529, %v526
    %v632 = vpack.c.b16 %v530, %v527
    %v633 = vpack.c.b16 %v534, %v531
    %v634 = vpack.c.b16 %v535, %v532
    %v635 = vpack.c.b16 %v536, %v533
    %v636 = vpack.c.b16 %v540, %v537
    %v637 = vpack.c.b16 %v541, %v538
    %v638 = vpack.c.b16 %v542, %v539
    %v639 = vpack.c.b16 %v546, %v543
    %v640 = vpack.c.b16 %v547, %v544
    %v641 = vpack.c.b16 %v548, %v545
    %v642 = vpack.c.b16 %v552, %v549
    %v643 = vpack.c.b16 %v553, %v550
    %v644 = vpack.c.b16 %v554, %v551
    %v645 = vpack.c.b16 %v558, %v555
    %v646 = vpack.c.b16 %v559, %v556
    %v647 = vpack.c.b16 %v560, %v557
    %v648 = vpack.c.b16 %v564, %v561
    %v649 = vpack.c.b16 %v565, %v562
    %v650 = vpack.c.b16 %v566, %v563
    %v651 = vpack.c.b16 %v570, %v567
    %v652 = vpack.c.b16 %v571, %v568
    %v653 = vpack.c.b16 %v572, %v569
    %v654 = vpack.c.b16 %v576, %v573
    %v655 = vpack.c.b16 %v577, %v574
    %v656 = vpack.c.b16 %v578, %v575
    %v657 = vpack.c.b16 %v582, %v579
    %v658 = vpack.c.b16 %v583, %v580
    %v659 = vpack.c.b16 %v584, %v581
    %vm735 = vcmask 130048
    %v737 = vsel %vm735, %v217, 0
    %739 = vmatprep.subr.bf16.mxu0 %v586
    %740 = vmatpush1.bf16.msra.mxu0 %v585
    %741 = vmatprep.subr.bf16.mxu0 %v589
    %742 = vmatpush1.bf16.msra.mxu0 %v588
    %743 = vmatprep.subr.bf16.mxu0 %v592
    %744 = vmatpush1.bf16.msra.mxu0 %v591
    %745 = vmatprep.subr.bf16.mxu0 %v595
    %746 = vmatpush1.bf16.msra.mxu0 %v594
    %747 = vmatprep.subr.bf16.mxu0 %v598
    %748 = vmatpush1.bf16.msra.mxu0 %v597
    %749 = vmatprep.subr.bf16.mxu0 %v601
    %750 = vmatpush1.bf16.msra.mxu0 %v600
    %751 = vmatprep.subr.bf16.mxu0 %v604
    %752 = vmatpush1.bf16.msra.mxu0 %v603
    %753 = vmatprep.subr.bf16.mxu0 %v607
    %754 = vmatpush1.bf16.msra.mxu0 %v606
    %755 = vmatprep.subr.bf16.mxu0 %v610
    %756 = vmatpush1.bf16.msra.mxu0 %v609
    %757 = vmatprep.subr.bf16.mxu0 %v613
    %758 = vmatpush1.bf16.msra.mxu0 %v612
    %759 = vmatprep.subr.bf16.mxu0 %v616
    %760 = vmatpush1.bf16.msra.mxu0 %v615
    %761 = vmatprep.subr.bf16.mxu0 %v619
    %762 = vmatpush1.bf16.msra.mxu0 %v618
    %763 = vmatprep.subr.bf16.mxu0 %v622
    %764 = vmatpush1.bf16.msra.mxu0 %v621
    %765 = vmatprep.subr.bf16.mxu0 %v625
    %766 = vmatpush1.bf16.msra.mxu0 %v624
    %767 = vmatprep.subr.bf16.mxu0 %v628
    %768 = vmatpush1.bf16.msra.mxu0 %v627
    %769 = vmatprep.subr.bf16.mxu0 %v631
    %770 = vmatpush1.bf16.msra.mxu0 %v630
    %771 = vmatprep.mubr.bf16.mxu0 %v215
    %772 = vmatmul.mubr.bf16.gmra.mrb[0].mxu0 %v214
    %v773 = vpop.f32.mrb[0].mxu0
    %v774 = vadd.f32 %v323, %v773
    %v775 = vpop.f32.mrb[0].mxu0
    %v776 = vadd.f32 %v327, %v775
    %v777 = vpop.f32.mrb[0].mxu0
    %v778 = vpop.f32.mrb[0].mxu0
    %779 = vdwg.mxu0
    %780 = vmatprep.subr.bf16.mxu0 %v634
    %781 = vmatpush1.bf16.msra.mxu0 %v633
    %782 = vmatprep.subr.bf16.mxu0 %v637
    %783 = vmatpush1.bf16.msra.mxu0 %v636
    %784 = vmatprep.subr.bf16.mxu0 %v640
    %785 = vmatpush1.bf16.msra.mxu0 %v639
    %786 = vmatprep.subr.bf16.mxu0 %v643
    %787 = vmatpush1.bf16.msra.mxu0 %v642
    %788 = vmatprep.subr.bf16.mxu0 %v646
    %789 = vmatpush1.bf16.msra.mxu0 %v645
    %790 = vmatprep.subr.bf16.mxu0 %v649
    %791 = vmatpush1.bf16.msra.mxu0 %v648
    %792 = vmatprep.subr.bf16.mxu0 %v652
    %793 = vmatpush1.bf16.msra.mxu0 %v651
    %794 = vmatprep.subr.bf16.mxu0 %v655
    %795 = vmatpush1.bf16.msra.mxu0 %v654
    %796 = vmatprep.subr.bf16.mxu0 %v658
    %797 = vmatpush1.bf16.msra.mxu0 %v657
    %798 = vmatprep.subr.bf16.mxu0 0
    %799 = vmatpush1.bf16.msra.mxu0 0
    %800 = vmatprep.subr.bf16.mxu0 0
    %801 = vmatpush1.bf16.msra.mxu0 0
    %802 = vmatprep.subr.bf16.mxu0 0
    %803 = vmatpush1.bf16.msra.mxu0 0
    %804 = vmatprep.subr.bf16.mxu0 0
    %805 = vmatpush1.bf16.msra.mxu0 0
    %806 = vmatprep.subr.bf16.mxu0 0
    %807 = vmatpush1.bf16.msra.mxu0 0
    %808 = vmatprep.subr.bf16.mxu0 0
    %809 = vmatpush1.bf16.msra.mxu0 0
    %810 = vmatprep.subr.bf16.mxu0 0
    %811 = vmatpush1.bf16.msra.mxu0 0
    %812 = vmatprep.mubr.bf16.mxu0 %v737
    %813 = vmatmul.mubr.bf16.gmra.mrb[0].mxu0 %v216
    %v814 = vpop.f32.mrb[0].mxu0
    %v815 = vadd.f32 %v774, %v814
    %v816 = vpop.f32.mrb[0].mxu0
    %v817 = vadd.f32 %v776, %v816
    %v818 = vpop.f32.mrb[0].mxu0
    %v819 = vpop.f32.mrb[0].mxu0
    %820 = vdwg.mxu0
    %821 = vmatprep.subr.bf16.mxu0 0
    %822 = vmatpush1.bf16.msra.mxu0 %v587
    %823 = vmatprep.subr.bf16.mxu0 0
    %824 = vmatpush1.bf16.msra.mxu0 %v590
    %825 = vmatprep.subr.bf16.mxu0 0
    %826 = vmatpush1.bf16.msra.mxu0 %v593
    %827 = vmatprep.subr.bf16.mxu0 0
    %828 = vmatpush1.bf16.msra.mxu0 %v596
    %829 = vmatprep.subr.bf16.mxu0 0
    %830 = vmatpush1.bf16.msra.mxu0 %v599
    %831 = vmatprep.subr.bf16.mxu0 0
    %832 = vmatpush1.bf16.msra.mxu0 %v602
    %833 = vmatprep.subr.bf16.mxu0 0
    %834 = vmatpush1.bf16.msra.mxu0 %v605
    %835 = vmatprep.subr.bf16.mxu0 0
    %836 = vmatpush1.bf16.msra.mxu0 %v608
    %837 = vmatprep.subr.bf16.mxu0 0
    %838 = vmatpush1.bf16.msra.mxu0 %v611
    %839 = vmatprep.subr.bf16.mxu0 0
    %840 = vmatpush1.bf16.msra.mxu0 %v614
    %841 = vmatprep.subr.bf16.mxu0 0
    %842 = vmatpush1.bf16.msra.mxu0 %v617
    %843 = vmatprep.subr.bf16.mxu0 0
    %844 = vmatpush1.bf16.msra.mxu0 %v620
    %845 = vmatprep.subr.bf16.mxu0 0
    %846 = vmatpush1.bf16.msra.mxu0 %v623
    %847 = vmatprep.subr.bf16.mxu0 0
    %848 = vmatpush1.bf16.msra.mxu0 %v626
    %849 = vmatprep.subr.bf16.mxu0 0
    %850 = vmatpush1.bf16.msra.mxu0 %v629
    %851 = vmatprep.subr.bf16.mxu0 0
    %852 = vmatpush1.bf16.msra.mxu0 %v632
    %853 = vmatprep.mubr.bf16.mxu0 %v215
    %854 = vmatmul.mubr.bf16.gmra.mrb[0].mxu0 %v214
    %v855 = vpop.f32.mrb[0].mxu0
    %v856 = vadd.f32 %v331, %v855
    %v857 = vpop.f32.mrb[0].mxu0
    %v858 = vpop.f32.mrb[0].mxu0
    %v859 = vpop.f32.mrb[0].mxu0
    %860 = vdwg.mxu0
    %861 = vmatprep.subr.bf16.mxu0 0
    %862 = vmatpush1.bf16.msra.mxu0 %v635
    %863 = vmatprep.subr.bf16.mxu0 0
    %864 = vmatpush1.bf16.msra.mxu0 %v638
    %865 = vmatprep.subr.bf16.mxu0 0
    %866 = vmatpush1.bf16.msra.mxu0 %v641
    %867 = vmatprep.subr.bf16.mxu0 0
    %868 = vmatpush1.bf16.msra.mxu0 %v644
    %869 = vmatprep.subr.bf16.mxu0 0
    %870 = vmatpush1.bf16.msra.mxu0 %v647
    %871 = vmatprep.subr.bf16.mxu0 0
    %872 = vmatpush1.bf16.msra.mxu0 %v650
    %873 = vmatprep.subr.bf16.mxu0 0
    %874 = vmatpush1.bf16.msra.mxu0 %v653
    %875 = vmatprep.subr.bf16.mxu0 0
    %876 = vmatpush1.bf16.msra.mxu0 %v656
    %877 = vmatprep.subr.bf16.mxu0 0
    %878 = vmatpush1.bf16.msra.mxu0 %v659
    %879 = vmatprep.subr.bf16.mxu0 0
    %880 = vmatpush1.bf16.msra.mxu0 0
    %881 = vmatprep.subr.bf16.mxu0 0
    %882 = vmatpush1.bf16.msra.mxu0 0
    %883 = vmatprep.subr.bf16.mxu0 0
    %884 = vmatpush1.bf16.msra.mxu0 0
    %885 = vmatprep.subr.bf16.mxu0 0
    %886 = vmatpush1.bf16.msra.mxu0 0
    %887 = vmatprep.subr.bf16.mxu0 0
    %888 = vmatpush1.bf16.msra.mxu0 0
    %889 = vmatprep.subr.bf16.mxu0 0
    %890 = vmatpush1.bf16.msra.mxu0 0
    %891 = vmatprep.subr.bf16.mxu0 0
    %892 = vmatpush1.bf16.msra.mxu0 0
    %893 = vmatprep.mubr.bf16.mxu0 %v737
    %894 = vmatmul.mubr.bf16.gmra.mrb[0].mxu0 %v216
    %v895 = vpop.f32.mrb[0].mxu0
    %v896 = vadd.f32 %v856, %v895
    %v897 = vpop.f32.mrb[0].mxu0
    %v898 = vpop.f32.mrb[0].mxu0
    %v899 = vpop.f32.mrb[0].mxu0
    %900 = vdwg.mxu0
    %v901 = vmax.f32 %v815, 0.0
    %v902 = vmax.f32 %v817, 0.0
    %v903 = vmax.f32 %v896, 0.0
    %v904 = vld [vmem:[%s5] sm:$0x7]
    %v906 = vlaneseq
    %v907 = vshrl.u32 %v906, 7
    %v908 = vsub.s32 0, %v907
    %v909 = vrot.slane %v904, %v908
    %v910 = vlaneseq
    %v911 = vshrl.u32 %v910, 7
    %v912 = vsub.s32 1, %v911
    %v913 = vrot.slane %v904, %v912
    %v914 = vlaneseq
    %v915 = vshrl.u32 %v914, 7
    %v916 = vsub.s32 2, %v915
    %v917 = vrot.slane %v904, %v916
    %v921 = vmul.f32 %v901, %v909
    %v922 = vmul.f32 %v902, %v913
    %v923 = vmul.f32 %v903, %v917
    %v924 = vadd.f32 %v921, %v922
    %vm925 = vcmask 359424
    %v926 = vsel %vm925, %v923, 0.0
    %v927 = vadd.f32 %v924, %v926
    %928 = vadd.xlane.f32.xlu0 %v927
    %v929 = vpop.xlane.xlu0 %928
    %s930 = sld [smem:[#allocation2]]
    %v931 = vstv %s930
    %v932 = vadd.f32 %v929, %v931
    %vm933 = vcmask 7168
    %934 = vst.msk [vmem:[%s7] sm:$0xff] %vm933, %v932
    // Predicated region
    $region42: #{tpu_custom_call.1} parent=1 // pred_check
      _
    $region43: #{tpu_custom_call.1} parent=1 // pred_check_branch
      %936 = sbr.rel (0) target = $region45
    $region44: #{tpu_custom_call.1} parent=1 // pred_region
      _
    $region45: #{tpu_custom_call.1} parent=1 // pred_fallthru
      _
    // Predicated region
    $region46: #{tpu_custom_call.1} parent=1 // pred_check
      _
    $region47: #{tpu_custom_call.1} parent=1 // pred_check_branch
      %938 = sbr.rel (0) target = $region49
    $region48: #{tpu_custom_call.1} parent=1 // pred_region
      _
    $region49: #{tpu_custom_call.1} parent=1 // pred_fallthru
      _
    %939 = vsyncpa [#allocation4], 1
    %940 = vsyncpa [#allocation6], 1

</llo_original>
